<compile_context>
chip_gen: v6e
topology: v6e:2x2x1
jax: 0.10.0
libtpu: 0.0.40
codegen_flags: <defaults>
</compile_context>

<pallas_src>
import jax
import jax.numpy as jnp
from jax import lax
from jax.experimental import pallas as pl
from jax.experimental.pallas import tpu as pltpu


def _gram_scale_kernel(row_ids_ref, col_ids_ref,   # scalar-prefetch (unused in body)
                       xt_ref, x_ref, rinv_ref, cinv_ref,
                       o_ref, acc_ref):
    """One (b, t, k) grid step.

    xt_ref  : (1, TL, TD_or_D) raw row stripe of x^T
    x_ref   : (1, TD, TL)      raw col stripe of x
    rinv_ref: (1, TL, 1)  f32  precomputed 1/max(sum_d|x|,eps) for row positions
    cinv_ref: (1, 1, TL)  f32  same for column positions
    o_ref   : (1, TL, TL) output tile (block index = (b, i[t], j[t]))
    acc_ref : (TL, TL) f32 Gram accumulator, resident across k
    """
    k = pl.program_id(2)

    @pl.when(k == 0)
    def _init():
        acc_ref[...] = jnp.zeros_like(acc_ref)

    # Raw Gram tile on the MXU; normalization applied once after the K loop.
    acc_ref[...] += lax.dot_general(
        xt_ref[0], x_ref[0],
        dimension_numbers=(((1,), (0,)), ((), ())),
        preferred_element_type=jnp.float32,
    )

    @pl.when(k == pl.num_programs(2) - 1)
    def _finalize():
        # (TL,1) * (1,TL) broadcasts; two VPU muls once per output tile.
        o_ref[0] = (acc_ref[...] * rinv_ref[0] * cinv_ref[0]).astype(o_ref.dtype)


def _reference(pos_embed):
    """Pure-XLA reference (also the small-shape fallback)."""
    x32 = pos_embed.astype(jnp.float32)
    denom = jnp.maximum(jnp.sum(jnp.abs(x32), axis=1, keepdims=True),
                        jnp.float32(1e-12))
    xn = x32 / denom
    return jnp.einsum("bdl,bdm->blm", xn, xn)


def custom_attn_cosine_similarity(pos_embed, *, tl=None, td=None,
                                  matmul_dtype="auto"):
    """pos_embed: (B, D, L) -> (B, L, L). L1-normalize over D, then x^T @ x."""
    B, D, L = pos_embed.shape
    out_dtype = pos_embed.dtype

    # Small-shape fallback (module's typical B=2, D=32, L=16 usage): XLA wins.
    if L < 128:
        return _reference(pos_embed).astype(out_dtype)

    # --- wrapper-side f32 L1 norms (before any operand downcast) -------------
    l1 = jnp.sum(jnp.abs(pos_embed.astype(jnp.float32)), axis=1)      # (B, L)
    inv = 1.0 / jnp.maximum(l1, jnp.float32(1e-12))                   # (B, L)
    inv_row = inv[:, :, None]                                         # (B, L, 1)
    inv_col = inv[:, None, :]                                         # (B, 1, L)

    # --- MXU operand dtype ----------------------------------------------------
    if isinstance(matmul_dtype, str) and matmul_dtype == "auto":
        matmul_dtype = jnp.bfloat16 if L >= 512 else None
    xop = pos_embed if matmul_dtype is None else pos_embed.astype(matmul_dtype)
    xt = jnp.swapaxes(xop, 1, 2)   # (B, L, D): LHS layout, no in-kernel transpose

    in_item = jnp.dtype(xop.dtype).itemsize
    out_item = jnp.dtype(out_dtype).itemsize

    # --- VMEM budget / tile selection ----------------------------------------
    try:
        info = pltpu.get_tpu_info()
        phys_vmem = getattr(info, "vmem_capacity_bytes", 64 * 2**20)
    except Exception:
        phys_vmem = 64 * 2**20          # assume v7x (most restrictive: 64 MiB)
    cap = int(phys_vmem * 3 // 4)       # headroom for compiler-internal scratch

    def vmem_budget(tl_, td_):
        lhs = 2 * tl_ * td_ * in_item          # double-buffered LHS tiles
        rhs = 2 * td_ * tl_ * in_item          # double-buffered RHS tiles
        out = 2 * tl_ * tl_ * out_item         # double-buffered output tiles
        acc = tl_ * tl_ * 4                    # f32 accumulator scratch
        scales = 4 * tl_ * 4                   # row/col inv-norm tiles
        return lhs + rhs + out + acc + scales

    tl_cands = [tl] if tl is not None else (
        [c for c in (1024, 512, 256, 128) if L % c == 0] or [L])
    td_cands = [td] if td is not None else (
        [D] + [c for c in (2048, 1024, 512, 256, 128) if D % c == 0 and c < D])

    pick = None
    for tl_ in tl_cands:                 # larger tl first: HBM traffic ~ L/tl
        for td_ in td_cands:             # td == D first: K == 1, LHS resident
            if vmem_budget(tl_, td_) + (4 << 20) <= cap:
                pick = (tl_, td_)
                break
        if pick is not None:
            break
    if pick is None:
        pick = (tl_cands[-1], td_cands[-1])
    tl, td = pick
    assert L % tl == 0 and D % td == 0, (L, tl, D, td)
    assert tl == L or tl % 128 == 0, tl          # (8,128) layout constraint
    assert td == D or td % 128 == 0, td

    nt = L // tl
    nk = D // td

    # --- Gram symmetry: only j >= i tiles -------------------------------------
    pairs = [(i, j) for i in range(nt) for j in range(i, nt)]
    row_ids = jnp.asarray([p[0] for p in pairs], dtype=jnp.int32)
    col_ids = jnp.asarray([p[1] for p in pairs], dtype=jnp.int32)
    num_pairs = len(pairs)

    vmem_limit = int(min(cap, max(32 << 20, vmem_budget(tl, td) + (4 << 20))))

    if td == D:
        # K == 1: LHS row stripe block index is j/k-invariant -> stays resident
        # in VMEM across the whole j sweep for a given i.
        lhs_spec = pl.BlockSpec((1, tl, D), lambda b, t, k, ri, ci: (b, ri[t], 0))
    else:
        # TODO(synk): for very large D the LHS stripe is re-streamed per k; a
        # resident full-D stripe + 128-aligned lane-dim slice would cut that too.
        lhs_spec = pl.BlockSpec((1, tl, td), lambda b, t, k, ri, ci: (b, ri[t], k))

    out = pl.pallas_call(
        _gram_scale_kernel,
        out_shape=jax.ShapeDtypeStruct((B, L, L), out_dtype),
        grid_spec=pltpu.PrefetchScalarGridSpec(
            num_scalar_prefetch=2,
            grid=(B, num_pairs, nk),
            in_specs=[
                lhs_spec,
                pl.BlockSpec((1, td, tl), lambda b, t, k, ri, ci: (b, k, ci[t])),
                pl.BlockSpec((1, tl, 1), lambda b, t, k, ri, ci: (b, ri[t], 0)),
                pl.BlockSpec((1, 1, tl), lambda b, t, k, ri, ci: (b, 0, ci[t])),
            ],
            out_specs=pl.BlockSpec(
                (1, tl, tl), lambda b, t, k, ri, ci: (b, ri[t], ci[t])),
            scratch_shapes=[pltpu.VMEM((tl, tl), jnp.float32)],
        ),
        # NOTE: the accumulator scratch is only valid because the reduction
        # axis k is the innermost grid axis and marked "arbitrary"; do not
        # reorder the grid or mark k "parallel".
        compiler_params=pltpu.CompilerParams(
            dimension_semantics=("parallel", "parallel", "arbitrary"),
            vmem_limit_bytes=vmem_limit,
        ),
    )(row_ids, col_ids, xt, xop, inv_row, inv_col)

    if nt > 1:
        # Mirror the strictly-lower block triangle (unvisited tiles) from the
        # computed upper tiles; diagonal tiles were written in full.
        blk = jnp.arange(L, dtype=jnp.int32) // tl
        upper = (blk[:, None] <= blk[None, :])[None]          # (1, L, L) bool
        out = jnp.where(upper, out, jnp.swapaxes(out, 1, 2))
    return out


if __name__ == "__main__":
    key = jax.random.PRNGKey(0)
    k1, k2, k3 = jax.random.split(key, 3)

    # Config A: multi-tile (L, L) output, D reduction (k loop), symmetry mirror
    # (grid = (2, 3, 2) after j>=i flattening), exact f32 MXU path.
    x1 = jax.random.normal(k1, (2, 256, 256), dtype=jnp.float32)
    out1 = jax.block_until_ready(custom_attn_cosine_similarity(x1, tl=128, td=128))
    ref1 = _reference(x1)
    assert out1.shape == (2, 256, 256), out1.shape
    assert jnp.allclose(out1, ref1, atol=1e-5, rtol=1e-5), float(
        jnp.max(jnp.abs(out1 - ref1)))

    # Config B: tiny shape matching the module's typical usage -> XLA fallback.
    x2 = jax.random.normal(k2, (2, 32, 16), dtype=jnp.float32)
    out2 = jax.block_until_ready(custom_attn_cosine_similarity(x2))
    ref2 = _reference(x2)
    assert out2.shape == (2, 16, 16), out2.shape
    assert jnp.allclose(out2, ref2, atol=1e-5, rtol=1e-5), float(
        jnp.max(jnp.abs(out2 - ref2)))

    # Config C: bf16 MXU operands (f32 accumulation + f32 norms), auto tiling
    # (td == D -> K == 1, resident LHS stripe), 3x3 block-triangle of tiles.
    x3 = jax.random.normal(k3, (2, 256, 384), dtype=jnp.float32)
    out3 = jax.block_until_ready(
        custom_attn_cosine_similarity(x3, matmul_dtype=jnp.bfloat16))
    ref3 = _reference(x3)
    assert out3.shape == (2, 384, 384), out3.shape
    rel = float(jnp.max(jnp.abs(out3 - ref3)) / jnp.max(jnp.abs(ref3)))
    assert rel < 5e-2, rel

    print("KERNEL_OK")
</pallas_src>

<mosaic_0001>
module attributes {stable_mosaic.version = 11 : i64} {
  func.func @_gram_scale_kernel(%arg0: i32, %arg1: i32, %arg2: i32, %arg3: memref<3xi32, #tpu.memory_space<smem>>, %arg4: memref<3xi32, #tpu.memory_space<smem>>, %arg5: memref<1x128x128xf32, #tpu.memory_space<vmem>>, %arg6: memref<1x128x128xf32, #tpu.memory_space<vmem>>, %arg7: memref<1x128x1xf32, #tpu.memory_space<vmem>>, %arg8: memref<1x1x128xf32, #tpu.memory_space<vmem>>, %arg9: memref<1x128x128xf32, #tpu.memory_space<vmem>>, %arg10: memref<128x128xf32, #tpu.memory_space<vmem>>) attributes {dimension_semantics = [#tpu.dimension_semantics<parallel>, #tpu.dimension_semantics<parallel>, #tpu.dimension_semantics<arbitrary>], iteration_bounds = array<i64: 2, 3, 2>, scalar_prefetch = 2 : i64, scratch_operands = 1 : i64, tpu.core_type = #tpu.core_type<tc>, window_params = [{transform_indices = @transform_0, window_bounds = array<i64: 1, 128, 128>}, {transform_indices = @transform_1, window_bounds = array<i64: 1, 128, 128>}, {transform_indices = @transform_2, window_bounds = array<i64: 1, 128, 1>}, {transform_indices = @transform_3, window_bounds = array<i64: 1, 1, 128>}, {transform_indices = @transform_4, window_bounds = array<i64: 1, 128, 128>}]} {
    %c0_i32 = arith.constant 0 : i32
    %0 = arith.cmpi eq, %arg2, %c0_i32 : i32
    %1 = arith.extui %0 : i1 to i32
    %c0_i32_0 = arith.constant 0 : i32
    %2 = arith.cmpi ne, %1, %c0_i32_0 : i32
    scf.if %2 {
      %cst_11 = arith.constant 0.000000e+00 : f32
      %14 = vector.broadcast %cst_11 : f32 to vector<128x128xf32>
      %c0_12 = arith.constant 0 : index
      %c0_13 = arith.constant 0 : index
      %15 = vector.load %arg10[%c0_12, %c0_13] : memref<128x128xf32, #tpu.memory_space<vmem>>, vector<128x128xf32>
      tpu.vector_store %arg10[%c0_12, %c0_13], %14 {strides = array<i32>} : memref<128x128xf32, #tpu.memory_space<vmem>>, vector<128x128xf32>,
    } else {
    }
    %c0 = arith.constant 0 : index
    %c0_1 = arith.constant 0 : index
    %3 = vector.load %arg10[%c0, %c0_1] : memref<128x128xf32, #tpu.memory_space<vmem>>, vector<128x128xf32>
    %c0_2 = arith.constant 0 : index
    %c0_3 = arith.constant 0 : index
    %c0_4 = arith.constant 0 : index
    %4 = vector.load %arg5[%c0_2, %c0_3, %c0_4] : memref<1x128x128xf32, #tpu.memory_space<vmem>>, vector<1x128x128xf32>
    %5 = vector.shape_cast %4 : vector<1x128x128xf32> to vector<128x128xf32>
    %c0_5 = arith.constant 0 : index
    %c0_6 = arith.constant 0 : index
    %c0_7 = arith.constant 0 : index
    %6 = vector.load %arg6[%c0_5, %c0_6, %c0_7] : memref<1x128x128xf32, #tpu.memory_space<vmem>>, vector<1x128x128xf32>
    %7 = vector.shape_cast %6 : vector<1x128x128xf32> to vector<128x128xf32>
    %cst = arith.constant dense<0.000000e+00> : vector<128x128xf32>
    %8 = tpu.matmul %5, %7, %cst {dimension_numbers = #tpu.dot_dimension_numbers<[1], [0], [0], [1], [0, 0, 1, 1], [], []>} : vector<128x128xf32>, vector<128x128xf32>, vector<128x128xf32> -> vector<128x128xf32>
    %9 = arith.addf %3, %8 : vector<128x128xf32>
    %c0_8 = arith.constant 0 : index
    %c0_9 = arith.constant 0 : index
    %10 = vector.load %arg10[%c0_8, %c0_9] : memref<128x128xf32, #tpu.memory_space<vmem>>, vector<128x128xf32>
    tpu.vector_store %arg10[%c0_8, %c0_9], %9 {strides = array<i32>} : memref<128x128xf32, #tpu.memory_space<vmem>>, vector<128x128xf32>,
    %c1_i32 = arith.constant 1 : i32
    %11 = arith.cmpi eq, %arg2, %c1_i32 : i32
    %12 = arith.extui %11 : i1 to i32
    %c0_i32_10 = arith.constant 0 : i32
    %13 = arith.cmpi ne, %12, %c0_i32_10 : i32
    scf.if %13 {
      %c0_11 = arith.constant 0 : index
      %c0_12 = arith.constant 0 : index
      %14 = vector.load %arg10[%c0_11, %c0_12] : memref<128x128xf32, #tpu.memory_space<vmem>>, vector<128x128xf32>
      %c0_13 = arith.constant 0 : index
      %c0_14 = arith.constant 0 : index
      %c0_15 = arith.constant 0 : index
      %15 = vector.load %arg7[%c0_13, %c0_14, %c0_15] : memref<1x128x1xf32, #tpu.memory_space<vmem>>, vector<1x128x1xf32>
      %16 = vector.shape_cast %15 : vector<1x128x1xf32> to vector<128x1xf32>
      %17 = vector.broadcast %16 : vector<128x1xf32> to vector<128x128xf32>
      %18 = arith.mulf %14, %17 : vector<128x128xf32>
      %c0_16 = arith.constant 0 : index
      %c0_17 = arith.constant 0 : index
      %c0_18 = arith.constant 0 : index
      %19 = vector.load %arg8[%c0_16, %c0_17, %c0_18] : memref<1x1x128xf32, #tpu.memory_space<vmem>>, vector<1x1x128xf32>
      %20 = vector.shape_cast %19 : vector<1x1x128xf32> to vector<1x128xf32>
      %21 = vector.broadcast %20 : vector<1x128xf32> to vector<128x128xf32>
      %22 = arith.mulf %18, %21 : vector<128x128xf32>
      %c0_19 = arith.constant 0 : index
      %c0_20 = arith.constant 0 : index
      %c0_21 = arith.constant 0 : index
      %23 = vector.load %arg9[%c0_19, %c0_20, %c0_21] : memref<1x128x128xf32, #tpu.memory_space<vmem>>, vector<1x128x128xf32>
      %24 = vector.shape_cast %23 : vector<1x128x128xf32> to vector<128x128xf32>
      %25 = vector.shape_cast %22 : vector<128x128xf32> to vector<1x128x128xf32>
      tpu.vector_store %arg9[%c0_19, %c0_20, %c0_21], %25 {strides = array<i32>} : memref<1x128x128xf32, #tpu.memory_space<vmem>>, vector<1x128x128xf32>,
    } else {
    }
    return
  }
  func.func @transform_0(%arg0: i32, %arg1: i32, %arg2: i32, %arg3: memref<3xi32, #tpu.memory_space<smem>>, %arg4: memref<3xi32, #tpu.memory_space<smem>>) -> (i32, i32, i32) {
    %0 = arith.index_cast %arg1 : i32 to index
    %1 = memref.load %arg3[%0] : memref<3xi32, #tpu.memory_space<smem>>
    %c0_i32 = arith.constant 0 : i32
    return %arg0, %1, %arg2 : i32, i32, i32
  }
  func.func @transform_1(%arg0: i32, %arg1: i32, %arg2: i32, %arg3: memref<3xi32, #tpu.memory_space<smem>>, %arg4: memref<3xi32, #tpu.memory_space<smem>>) -> (i32, i32, i32) {
    %0 = arith.index_cast %arg1 : i32 to index
    %1 = memref.load %arg4[%0] : memref<3xi32, #tpu.memory_space<smem>>
    %c0_i32 = arith.constant 0 : i32
    return %arg0, %arg2, %1 : i32, i32, i32
  }
  func.func @transform_2(%arg0: i32, %arg1: i32, %arg2: i32, %arg3: memref<3xi32, #tpu.memory_space<smem>>, %arg4: memref<3xi32, #tpu.memory_space<smem>>) -> (i32, i32, i32) {
    %0 = arith.index_cast %arg1 : i32 to index
    %1 = memref.load %arg3[%0] : memref<3xi32, #tpu.memory_space<smem>>
    %c0_i32 = arith.constant 0 : i32
    %c0_i32_0 = arith.constant 0 : i32
    return %arg0, %1, %c0_i32 : i32, i32, i32
  }
  func.func @transform_3(%arg0: i32, %arg1: i32, %arg2: i32, %arg3: memref<3xi32, #tpu.memory_space<smem>>, %arg4: memref<3xi32, #tpu.memory_space<smem>>) -> (i32, i32, i32) {
    %0 = arith.index_cast %arg1 : i32 to index
    %1 = memref.load %arg4[%0] : memref<3xi32, #tpu.memory_space<smem>>
    %c0_i32 = arith.constant 0 : i32
    %c0_i32_0 = arith.constant 0 : i32
    return %arg0, %c0_i32, %1 : i32, i32, i32
  }
  func.func @transform_4(%arg0: i32, %arg1: i32, %arg2: i32, %arg3: memref<3xi32, #tpu.memory_space<smem>>, %arg4: memref<3xi32, #tpu.memory_space<smem>>) -> (i32, i32, i32) {
    %0 = arith.index_cast %arg1 : i32 to index
    %1 = memref.load %arg3[%0] : memref<3xi32, #tpu.memory_space<smem>>
    %2 = arith.index_cast %arg1 : i32 to index
    %3 = memref.load %arg4[%2] : memref<3xi32, #tpu.memory_space<smem>>
    %c0_i32 = arith.constant 0 : i32
    return %arg0, %1, %3 : i32, i32, i32
  }
}

</mosaic_0001>

<llo_original>
// kernel: tpu_custom_call.1
$region0: #{tpu_custom_call.1}
  #allocation0 [shape = 'u32[]', space=smem, size = 0x4, offset = 0x4, fixed_abs, tag = 'smem constant byte address 0x4 - core index']
  #allocation1 [shape = 'u32[144,128]{1,0:T(1,128)}', space=vmem, size = 0x12000, scoped, tag = 'internal scratch']
  #allocation2 [shape = 'f32[128,128]{1,0:T(8,128)}', space=vmem, size = 0x10000, scoped, tag = 'scratch operand']
  #allocation3 [shape = 's32[1]{0}', space=sflag, size = 0x4, scoped, tag = 'scoped memory for tpu_custom_call.1']
  #allocation4 [shape = 'u8[512]{0}', space=smem, size = 0x200, scoped, tag = 'prefetched SMEM operand 0']
  #allocation5 [shape = 'u8[512]{0}', space=smem, size = 0x200, scoped, tag = 'prefetched SMEM operand 1']
  %s0 = inlined_call_operand.vmem [shape: s32[3], index: 0, kind: input, shape index: {}]
  %s1 = inlined_call_operand.vmem [shape: s32[3], index: 1, kind: input, shape index: {}]
  %s2 = inlined_call_operand.hbm [shape: f32[2,256,256], index: 2, kind: input, shape index: {}]
  %s3 = inlined_call_operand.hbm [shape: f32[2,256,256], index: 3, kind: input, shape index: {}]
  %s4 = inlined_call_operand.vmem [shape: f32[2,256,1], index: 4, kind: input, shape index: {}]
  %s5 = inlined_call_operand.vmem [shape: f32[2,1,256], index: 5, kind: input, shape index: {}]
  %s6 = inlined_call_operand.hbm [shape: f32[2,256,256], index: 6, kind: output, shape index: {}]
  %s7 = sld [smem:[#allocation0]]
  $region65: #{tpu_custom_call.1} parent=0
    _
  %s9 = ssub.s32 1, %s7
  %s10 = scalar_select 0, %s9, %s7
  %s11 = sshll.u32 %s0, 4
  %s12 = int_to_ptr.vmem [resolvable:$true] %s11
  %14 = dma.vmem_to_smem %s12, 16, [#allocation4], [#allocation3]
  %s15 = sshll.u32 %s1, 4
  %s16 = int_to_ptr.vmem [resolvable:$true] %s15
  %18 = dma.vmem_to_smem %s16, 16, [#allocation5], [#allocation3]
  %19 = dma.done [#allocation3], 32
  %20 = sfence
  $region1: #{tpu_custom_call.1} parent=0
    #allocation6 [shape = 'u8[131072]{0}', space=vmem, size = 0x20000, scoped, tag = 'input window, operand 2']
    #allocation7 [shape = 's32[2]{0}', space=sflag, size = 0x8, scoped, tag = 'scoped memory for tpu_custom_call.1']
    #allocation8 [shape = 's32[2]{0}', space=sflag, size = 0x8, scoped, tag = 'scoped memory for tpu_custom_call.1']
    #allocation9 [shape = 'u8[131072]{0}', space=vmem, size = 0x20000, scoped, tag = 'input window, operand 3']
    #allocation10 [shape = 's32[2]{0}', space=sflag, size = 0x8, scoped, tag = 'scoped memory for tpu_custom_call.1']
    #allocation11 [shape = 'u8[131072]{0}', space=vmem, size = 0x20000, scoped, tag = 'output window, operand 0']
    %21 = vsyncpa [#allocation7], 0
    %s22 = scalar_lea.sflag [#allocation7], 1
    %23 = vsyncpa %s22, 0
    %24 = vsyncpa [#allocation10], 0
    %s25 = scalar_lea.sflag [#allocation10], 1
    %26 = vsyncpa %s25, 0
    %27 = vsyncpa [#allocation8], 0
    %s28 = scalar_lea.sflag [#allocation8], 1
    %29 = vsyncpa %s28, 0
    loop: start=0, step=1, limit=14
    $region2: #{tpu_custom_call.1} parent=1 // loop_pre_header
      _
    $region3: #{tpu_custom_call.1} parent=1 // loop_header
      %s31 = sphi 0, %s35
      %p32 = scmp.ge.s32.totalorder %s31, 14
      %s38 = sphi 0, %s57
      %s39 = sphi 0, %s53
      %s40 = sphi 0, %s49
      %s41 = sphi 0, %s38
      %s42 = sphi 0, %s39
      %s43 = sphi 0, %s40
      %s44 = sphi 0, %s41
      %s45 = sphi 0, %s42
      %s46 = sphi 0, %s43
      %s66 = sphi 0, %s68
      %s69 = sphi 0, %s66
      %s70 = sphi 0, %s69
      %s86 = sphi 0, %s70
      %s98 = sphi 0, %s100
      %s101 = sphi 0, %s98
      %s102 = sphi 0, %s101
      %s118 = sphi 0, %s102
      %s128 = sphi 0, %s130
      %s131 = sphi 0, %s128
      %s132 = sphi 0, %s131
      %s148 = sphi 0, %s132
      %s158 = sphi 0, %s160
      %s161 = sphi 0, %s158
      %s162 = sphi 0, %s161
      %s178 = sphi 0, %s162
      %s192 = sphi 0, %s194
      %s195 = sphi 0, %s192
      %s196 = sphi 0, %s195
      %s212 = sphi 0, %s196
    $region4: #{tpu_custom_call.1} parent=1 // loop_header_branch
      %34 = sbr.rel (%p32) target = $region8
    $region5: #{tpu_custom_call.1} parent=1 // loop_body
      %s36 = ssub.s32 %s31, 1
      %s37 = ssub.s32 %s31, 2
      %s47 = sadd.s32 1, %s40
      %p48 = scmp.ge.s32.totalorder %s47, 2
      %s49 = scalar_select %p48, 0, %s47
      %s50 = sadd.s32 1, %s39
      %s51 = scalar_select %p48, %s50, %s39
      %p52 = scmp.ge.s32.totalorder %s51, 3
      %s53 = scalar_select %p52, 0, %s51
      %s54 = sadd.s32 1, %s38
      %s55 = scalar_select %p52, %s54, %s38
      %p56 = scmp.ge.s32.totalorder %s55, 2
      %s57 = scalar_select %p56, 0, %s55
      %s58 = sld [smem:[#allocation4 + %s39]]
      %s59 = sld [smem:[#allocation4 + %s53]]
      %s60 = ssub.s32 %s38, %s57
      %s61 = ssub.s32 %s58, %s59
      %s62 = sor.u32 %s60, %s61
      %s63 = ssub.s32 %s40, %s49
      %s64 = sor.u32 %s62, %s63
      %p65 = scmp.eq.s32.totalorder %s64, 0
      %s67 = sadd.s32 %s66, 1
      %s68 = scalar_select %p65, %s66, %s67
      %p71 = pneg %p65
      %p72 = scmp.eq.s32.totalorder %s31, 11
      %p73 = por %p71, %p72
      %p74 = scmp.ne.s32.totalorder %s66, %s69
      %p75 = scmp.eq.s32.totalorder %s31, 0
      %p76 = por %p74, %p75
      %p77 = scmp.ne.s32.totalorder %s66, %s69
      %p78 = scmp.eq.s32.totalorder %s36, 11
      %p79 = por %p77, %p78
      %p80 = scmp.ne.s32.totalorder %s69, %s70
      %p81 = scmp.eq.s32.totalorder %s36, 0
      %p82 = por %p80, %p81
      %p83 = scmp.ne.s32.totalorder %s69, %s70
      %p84 = scmp.eq.s32.totalorder %s37, 11
      %p85 = por %p83, %p84
      %p87 = scmp.ne.s32.totalorder %s70, %s86
      %p88 = scmp.eq.s32.totalorder %s37, 0
      %p89 = por %p87, %p88
      %s90 = sld [smem:[#allocation5 + %s39]]
      %s91 = sld [smem:[#allocation5 + %s53]]
      %s92 = ssub.s32 %s38, %s57
      %s93 = ssub.s32 %s40, %s49
      %s94 = sor.u32 %s92, %s93
      %s95 = ssub.s32 %s90, %s91
      %s96 = sor.u32 %s94, %s95
      %p97 = scmp.eq.s32.totalorder %s96, 0
      %s99 = sadd.s32 %s98, 1
      %s100 = scalar_select %p97, %s98, %s99
      %p103 = pneg %p97
      %p104 = scmp.eq.s32.totalorder %s31, 11
      %p105 = por %p103, %p104
      %p106 = scmp.ne.s32.totalorder %s98, %s101
      %p107 = scmp.eq.s32.totalorder %s31, 0
      %p108 = por %p106, %p107
      %p109 = scmp.ne.s32.totalorder %s98, %s101
      %p110 = scmp.eq.s32.totalorder %s36, 11
      %p111 = por %p109, %p110
      %p112 = scmp.ne.s32.totalorder %s101, %s102
      %p113 = scmp.eq.s32.totalorder %s36, 0
      %p114 = por %p112, %p113
      %p115 = scmp.ne.s32.totalorder %s101, %s102
      %p116 = scmp.eq.s32.totalorder %s37, 11
      %p117 = por %p115, %p116
      %p119 = scmp.ne.s32.totalorder %s102, %s118
      %p120 = scmp.eq.s32.totalorder %s37, 0
      %p121 = por %p119, %p120
      %s122 = sld [smem:[#allocation4 + %s39]]
      %s123 = sld [smem:[#allocation4 + %s53]]
      %s124 = ssub.s32 %s38, %s57
      %s125 = ssub.s32 %s122, %s123
      %s126 = sor.u32 %s124, %s125
      %p127 = scmp.eq.s32.totalorder %s126, 0
      %s129 = sadd.s32 %s128, 1
      %s130 = scalar_select %p127, %s128, %s129
      %p133 = pneg %p127
      %p134 = scmp.eq.s32.totalorder %s31, 11
      %p135 = por %p133, %p134
      %p136 = scmp.ne.s32.totalorder %s128, %s131
      %p137 = scmp.eq.s32.totalorder %s31, 0
      %p138 = por %p136, %p137
      %p139 = scmp.ne.s32.totalorder %s128, %s131
      %p140 = scmp.eq.s32.totalorder %s36, 11
      %p141 = por %p139, %p140
      %p142 = scmp.ne.s32.totalorder %s131, %s132
      %p143 = scmp.eq.s32.totalorder %s36, 0
      %p144 = por %p142, %p143
      %p145 = scmp.ne.s32.totalorder %s131, %s132
      %p146 = scmp.eq.s32.totalorder %s37, 11
      %p147 = por %p145, %p146
      %p149 = scmp.ne.s32.totalorder %s132, %s148
      %p150 = scmp.eq.s32.totalorder %s37, 0
      %p151 = por %p149, %p150
      %s152 = sld [smem:[#allocation5 + %s39]]
      %s153 = sld [smem:[#allocation5 + %s53]]
      %s154 = ssub.s32 %s38, %s57
      %s155 = ssub.s32 %s152, %s153
      %s156 = sor.u32 %s154, %s155
      %p157 = scmp.eq.s32.totalorder %s156, 0
      %s159 = sadd.s32 %s158, 1
      %s160 = scalar_select %p157, %s158, %s159
      %p163 = pneg %p157
      %p164 = scmp.eq.s32.totalorder %s31, 11
      %p165 = por %p163, %p164
      %p166 = scmp.ne.s32.totalorder %s158, %s161
      %p167 = scmp.eq.s32.totalorder %s31, 0
      %p168 = por %p166, %p167
      %p169 = scmp.ne.s32.totalorder %s158, %s161
      %p170 = scmp.eq.s32.totalorder %s36, 11
      %p171 = por %p169, %p170
      %p172 = scmp.ne.s32.totalorder %s161, %s162
      %p173 = scmp.eq.s32.totalorder %s36, 0
      %p174 = por %p172, %p173
      %p175 = scmp.ne.s32.totalorder %s161, %s162
      %p176 = scmp.eq.s32.totalorder %s37, 11
      %p177 = por %p175, %p176
      %p179 = scmp.ne.s32.totalorder %s162, %s178
      %p180 = scmp.eq.s32.totalorder %s37, 0
      %p181 = por %p179, %p180
      %s182 = sld [smem:[#allocation4 + %s39]]
      %s183 = sld [smem:[#allocation5 + %s39]]
      %s184 = sld [smem:[#allocation4 + %s53]]
      %s185 = sld [smem:[#allocation5 + %s53]]
      %s186 = ssub.s32 %s38, %s57
      %s187 = ssub.s32 %s182, %s184
      %s188 = sor.u32 %s186, %s187
      %s189 = ssub.s32 %s183, %s185
      %s190 = sor.u32 %s188, %s189
      %p191 = scmp.eq.s32.totalorder %s190, 0
      %s193 = sadd.s32 %s192, 1
      %s194 = scalar_select %p191, %s192, %s193
      %p197 = pneg %p191
      %p198 = scmp.eq.s32.totalorder %s31, 11
      %p199 = por %p197, %p198
      %p200 = scmp.ne.s32.totalorder %s192, %s195
      %p201 = scmp.eq.s32.totalorder %s31, 0
      %p202 = por %p200, %p201
      %p203 = scmp.ne.s32.totalorder %s192, %s195
      %p204 = scmp.eq.s32.totalorder %s36, 11
      %p205 = por %p203, %p204
      %p206 = scmp.ne.s32.totalorder %s195, %s196
      %p207 = scmp.eq.s32.totalorder %s36, 0
      %p208 = por %p206, %p207
      %p209 = scmp.ne.s32.totalorder %s195, %s196
      %p210 = scmp.eq.s32.totalorder %s37, 11
      %p211 = por %p209, %p210
      %p213 = scmp.ne.s32.totalorder %s196, %s212
      %p214 = scmp.eq.s32.totalorder %s37, 0
      %p215 = por %p213, %p214
      %p216 = scmp.le.s32.totalorder 1, %s31
      %p217 = scmp.lt.s32.totalorder %s31, 13
      %p218 = pnand %p216, %p217
      %p219 = pneg %p218
      // Predicated region
      $region9: #{tpu_custom_call.1} parent=5 // pred_check
        _
      $region10: #{tpu_custom_call.1} parent=5 // pred_check_branch
        %221 = sbr.rel (%p218) target = $region12
      $region11: #{tpu_custom_call.1} parent=5 // pred_region
        %s222 = ssub.s32 %s31, 1
      $region12: #{tpu_custom_call.1} parent=5 // pred_fallthru
        _
      %p223 = scmp.lt.s32.totalorder %s31, 12
      // Predicated region
      $region13: #{tpu_custom_call.1} parent=5 // pred_check
        %p224 = pneg %p223
      $region14: #{tpu_custom_call.1} parent=5 // pred_check_branch
        %226 = sbr.rel (%p224) target = $region16
      $region15: #{tpu_custom_call.1} parent=5 // pred_region
        // Predicated region
        $region17: #{tpu_custom_call.1} parent=15 // pred_check
          %p227 = pneg %p76
        $region18: #{tpu_custom_call.1} parent=15 // pred_check_branch
          %229 = sbr.rel (%p227) target = $region20
        $region19: #{tpu_custom_call.1} parent=15 // pred_region
          %s230 = sand.u32 %s66, 1
          %s231 = scalar_lea.sflag [#allocation7], %s230
          %s232 = sand.u32 %s66, 1
          %s233 = smul.addr %s232, 128
          %s234 = scalar_lea.vmem [#allocation6], %s233
          %s235 = sld [smem:[#allocation4 + %s39]]
          %s236 = smul.u32 16, %s235
          %s238 = ssub.s32 2048, 2048
          %239 = vsyncadd %s231, %s238
          %s240 = smul.addr %s236, 2
          %s241 = sadd.s32 %s40, %s240
          %s242 = smul.addr %s38, 64
          %s243 = sadd.s32 %s241, %s242
          %s244 = smul.addr %s243, 128
          %s245 = scalar_lea.hbm %s2, %s244
          %s246 = sshll.u32 %s234, 4
          %s247 = int_to_ptr.vmem [resolvable:$true] %s246
          %252 = dma.hbm_to_vmem [thread:$0]  %s245, 2048, %s247, %s231, 256, 128, 8
        $region20: #{tpu_custom_call.1} parent=15 // pred_fallthru
          _
        // Predicated region
        $region21: #{tpu_custom_call.1} parent=15 // pred_check
          %p253 = pneg %p108
        $region22: #{tpu_custom_call.1} parent=15 // pred_check_branch
          %255 = sbr.rel (%p253) target = $region24
        $region23: #{tpu_custom_call.1} parent=15 // pred_region
          %s256 = sand.u32 %s98, 1
          %s257 = scalar_lea.sflag [#allocation10], %s256
          %s258 = sand.u32 %s98, 1
          %s259 = smul.addr %s258, 128
          %s260 = scalar_lea.vmem [#allocation9], %s259
          %s261 = sld [smem:[#allocation5 + %s39]]
          %s262 = smul.u32 16, %s40
          %s264 = ssub.s32 2048, 2048
          %265 = vsyncadd %s257, %s264
          %s266 = smul.addr %s262, 2
          %s267 = sadd.s32 %s261, %s266
          %s268 = smul.addr %s38, 64
          %s269 = sadd.s32 %s267, %s268
          %s270 = smul.addr %s269, 128
          %s271 = scalar_lea.hbm %s3, %s270
          %s272 = sshll.u32 %s260, 4
          %s273 = int_to_ptr.vmem [resolvable:$true] %s272
          %278 = dma.hbm_to_vmem [thread:$0]  %s271, 2048, %s273, %s257, 256, 128, 8
        $region24: #{tpu_custom_call.1} parent=15 // pred_fallthru
          _
        // Predicated region
        $region25: #{tpu_custom_call.1} parent=15 // pred_check
          %p279 = pneg %p138
        $region26: #{tpu_custom_call.1} parent=15 // pred_check_branch
          %281 = sbr.rel (%p279) target = $region28
        $region27: #{tpu_custom_call.1} parent=15 // pred_region
          %s282 = sld [smem:[#allocation4 + %s39]]
          %s283 = smul.u32 16, %s282
          %p284 = scmp.lt.s32.totalorder %s38, 1
          %s285 = scalar_select %p284, %s38, 1
          %p286 = scmp.lt.s32.totalorder %s283, 31
          %s287 = scalar_select %p286, %s283, 31
          %s288 = smul.addr %s285, 32
          %s289 = sadd.s32 %s287, %s288
          %s290 = smul.addr %s289, 8
          %s291 = scalar_lea.vmem %s4, %s290
          %s292 = sld [smem:[#allocation4 + %s39]]
          %s293 = smul.u32 16, %s292
        $region28: #{tpu_custom_call.1} parent=15 // pred_fallthru
          _
        // Predicated region
        $region29: #{tpu_custom_call.1} parent=15 // pred_check
          %p294 = pneg %p168
        $region30: #{tpu_custom_call.1} parent=15 // pred_check_branch
          %296 = sbr.rel (%p294) target = $region32
        $region31: #{tpu_custom_call.1} parent=15 // pred_region
          %s297 = sld [smem:[#allocation5 + %s39]]
          %p298 = scmp.lt.s32.totalorder %s38, 1
          %s299 = scalar_select %p298, %s38, 1
          %p300 = scmp.lt.s32.totalorder %s297, 1
          %s301 = scalar_select %p300, %s297, 1
          %s302 = smul.addr %s299, 2
          %s303 = sadd.s32 %s301, %s302
          %s304 = scalar_lea.vmem %s5, %s303
          %s305 = sld [smem:[#allocation5 + %s39]]
        $region32: #{tpu_custom_call.1} parent=15 // pred_fallthru
          _
      $region16: #{tpu_custom_call.1} parent=5 // pred_fallthru
        _
      %p306 = scmp.le.s32.totalorder 1, %s31
      %p307 = scmp.lt.s32.totalorder %s31, 13
      %p308 = pnand %p306, %p307
      %p309 = pneg %p308
      // Predicated region
      $region33: #{tpu_custom_call.1} parent=5 // pred_check
        _
      $region34: #{tpu_custom_call.1} parent=5 // pred_check_branch
        %311 = sbr.rel (%p308) target = $region36
      $region35: #{tpu_custom_call.1} parent=5 // pred_region
        %s312 = ssub.s32 %s31, 1
        %s313 = sand.u32 %s69, 1
        %s314 = scalar_lea.sflag [#allocation7], %s313
        %s315 = sand.u32 %s69, 1
        %s316 = smul.addr %s315, 128
        %s317 = scalar_lea.vmem [#allocation6], %s316
        // Predicated region
        $region37: #{tpu_custom_call.1} parent=35 // pred_check
          %p318 = pneg %p82
        $region38: #{tpu_custom_call.1} parent=35 // pred_check_branch
          %320 = sbr.rel (%p318) target = $region40
        $region39: #{tpu_custom_call.1} parent=35 // pred_region
          %321 = dma.done %s314, 2048
        $region40: #{tpu_custom_call.1} parent=35 // pred_fallthru
          _
        %s322 = sand.u32 %s101, 1
        %s323 = scalar_lea.sflag [#allocation10], %s322
        %s324 = sand.u32 %s101, 1
        %s325 = smul.addr %s324, 128
        %s326 = scalar_lea.vmem [#allocation9], %s325
        // Predicated region
        $region41: #{tpu_custom_call.1} parent=35 // pred_check
          %p327 = pneg %p114
        $region42: #{tpu_custom_call.1} parent=35 // pred_check_branch
          %329 = sbr.rel (%p327) target = $region44
        $region43: #{tpu_custom_call.1} parent=35 // pred_region
          %330 = dma.done %s323, 2048
        $region44: #{tpu_custom_call.1} parent=35 // pred_fallthru
          _
        %s331 = sand.u32 %s69, 1
        %s332 = scalar_lea.sflag [#allocation7], %s331
        %s333 = sand.u32 %s69, 1
        %s334 = smul.addr %s333, 128
        %s335 = scalar_lea.vmem [#allocation6], %s334
        %p336 = pneg %p82
        %p337 = pneg %p79
        %s338 = sand.u32 %s101, 1
        %s339 = scalar_lea.sflag [#allocation10], %s338
        %s340 = sand.u32 %s101, 1
        %s341 = smul.addr %s340, 128
        %s342 = scalar_lea.vmem [#allocation9], %s341
        %p343 = pneg %p114
        %p344 = pneg %p111
        %s345 = sld [smem:[#allocation4 + %s42]]
        %s346 = smul.u32 16, %s345
        %p347 = scmp.lt.s32.totalorder %s41, 1
        %s348 = scalar_select %p347, %s41, 1
        %p349 = scmp.lt.s32.totalorder %s346, 31
        %s350 = scalar_select %p349, %s346, 31
        %s351 = smul.addr %s348, 32
        %s352 = sadd.s32 %s350, %s351
        %s353 = smul.addr %s352, 8
        %s354 = scalar_lea.vmem %s4, %s353
        %p355 = pneg %p144
        %p356 = pneg %p141
        %s357 = sld [smem:[#allocation5 + %s42]]
        %p358 = scmp.lt.s32.totalorder %s41, 1
        %s359 = scalar_select %p358, %s41, 1
        %p360 = scmp.lt.s32.totalorder %s357, 1
        %s361 = scalar_select %p360, %s357, 1
        %s362 = smul.addr %s359, 2
        %s363 = sadd.s32 %s361, %s362
        %s364 = scalar_lea.vmem %s5, %s363
        %p365 = pneg %p174
        %p366 = pneg %p171
        %p367 = pneg %p208
        %p368 = pneg %p205
        %s369 = sand.u32 %s195, 1
        %s370 = scalar_lea.sflag [#allocation8], %s369
        %s371 = sand.u32 %s195, 1
        %s372 = smul.addr %s371, 128
        %s373 = scalar_lea.vmem [#allocation11], %s372
        %s374 = sld [smem:[#allocation4 + %s42]]
        %s375 = smul.u32 16, %s374
        %s376 = sld [smem:[#allocation5 + %s42]]
        %s377 = smul.u32 16, %s43
        %s378 = sld [smem:[#allocation4 + %s42]]
        %s379 = smul.u32 16, %s378
        %p380 = scmp.lt.s32.totalorder %s41, 1
        %s381 = scalar_select %p380, %s41, 1
        %p382 = scmp.lt.s32.totalorder %s379, 31
        %s383 = scalar_select %p382, %s379, 31
        %s384 = smul.addr %s381, 32
        %s385 = sadd.s32 %s383, %s384
        %s386 = smul.addr %s385, 8
        %s387 = scalar_lea.vmem %s4, %s386
        %s388 = sld [smem:[#allocation4 + %s42]]
        %s389 = smul.u32 16, %s388
        %s390 = sld [smem:[#allocation5 + %s42]]
        %p391 = scmp.lt.s32.totalorder %s41, 1
        %s392 = scalar_select %p391, %s41, 1
        %p393 = scmp.lt.s32.totalorder %s390, 1
        %s394 = scalar_select %p393, %s390, 1
        %s395 = smul.addr %s392, 2
        %s396 = sadd.s32 %s394, %s395
        %s397 = scalar_lea.vmem %s5, %s396
        %s398 = sld [smem:[#allocation5 + %s42]]
        %s399 = sld [smem:[#allocation4 + %s42]]
        %s400 = sld [smem:[#allocation5 + %s42]]
        %s401 = smul.u32 16, %s399
        %p402 = scmp.eq.s32.totalorder %s43, 0
        // Predicated region
        $region45: #{tpu_custom_call.1} parent=35 // pred_check
          %p403 = pneg %p402
        $region46: #{tpu_custom_call.1} parent=35 // pred_check_branch
          %405 = sbr.rel (%p403) target = $region48
        $region47: #{tpu_custom_call.1} parent=35 // pred_region
          %406 = vst [vmem:[#allocation2] sm:$0xff] 0.0
          %407 = vst [vmem:[#allocation2 + $0x8] sm:$0xff] 0.0
          %408 = vst [vmem:[#allocation2 + $0x10] sm:$0xff] 0.0
          %409 = vst [vmem:[#allocation2 + $0x18] sm:$0xff] 0.0
          %410 = vst [vmem:[#allocation2 + $0x20] sm:$0xff] 0.0
          %411 = vst [vmem:[#allocation2 + $0x28] sm:$0xff] 0.0
          %412 = vst [vmem:[#allocation2 + $0x30] sm:$0xff] 0.0
          %413 = vst [vmem:[#allocation2 + $0x38] sm:$0xff] 0.0
          %414 = vst [vmem:[#allocation2 + $0x40] sm:$0xff] 0.0
          %415 = vst [vmem:[#allocation2 + $0x48] sm:$0xff] 0.0
          %416 = vst [vmem:[#allocation2 + $0x50] sm:$0xff] 0.0
          %417 = vst [vmem:[#allocation2 + $0x58] sm:$0xff] 0.0
          %418 = vst [vmem:[#allocation2 + $0x60] sm:$0xff] 0.0
          %419 = vst [vmem:[#allocation2 + $0x68] sm:$0xff] 0.0
          %420 = vst [vmem:[#allocation2 + $0x70] sm:$0xff] 0.0
          %421 = vst [vmem:[#allocation2 + $0x78] sm:$0xff] 0.0
        $region48: #{tpu_custom_call.1} parent=35 // pred_fallthru
          _
        %v422 = vld [vmem:[#allocation2] sm:$0xff]
        %v423 = vld [vmem:[#allocation2 + $0x8] sm:$0xff]
        %v424 = vld [vmem:[#allocation2 + $0x10] sm:$0xff]
        %v425 = vld [vmem:[#allocation2 + $0x18] sm:$0xff]
        %v426 = vld [vmem:[#allocation2 + $0x20] sm:$0xff]
        %v427 = vld [vmem:[#allocation2 + $0x28] sm:$0xff]
        %v428 = vld [vmem:[#allocation2 + $0x30] sm:$0xff]
        %v429 = vld [vmem:[#allocation2 + $0x38] sm:$0xff]
        %v430 = vld [vmem:[#allocation2 + $0x40] sm:$0xff]
        %v431 = vld [vmem:[#allocation2 + $0x48] sm:$0xff]
        %v432 = vld [vmem:[#allocation2 + $0x50] sm:$0xff]
        %v433 = vld [vmem:[#allocation2 + $0x58] sm:$0xff]
        %v434 = vld [vmem:[#allocation2 + $0x60] sm:$0xff]
        %v435 = vld [vmem:[#allocation2 + $0x68] sm:$0xff]
        %v436 = vld [vmem:[#allocation2 + $0x70] sm:$0xff]
        %v437 = vld [vmem:[#allocation2 + $0x78] sm:$0xff]
        %v438 = vld [vmem:[%s317] sm:$0xff]
        %v439 = vld [vmem:[%s317 + $0x8] sm:$0xff]
        %v440 = vld [vmem:[%s317 + $0x10] sm:$0xff]
        %v441 = vld [vmem:[%s317 + $0x18] sm:$0xff]
        %v442 = vld [vmem:[%s317 + $0x20] sm:$0xff]
        %v443 = vld [vmem:[%s317 + $0x28] sm:$0xff]
        %v444 = vld [vmem:[%s317 + $0x30] sm:$0xff]
        %v445 = vld [vmem:[%s317 + $0x38] sm:$0xff]
        %v446 = vld [vmem:[%s317 + $0x40] sm:$0xff]
        %v447 = vld [vmem:[%s317 + $0x48] sm:$0xff]
        %v448 = vld [vmem:[%s317 + $0x50] sm:$0xff]
        %v449 = vld [vmem:[%s317 + $0x58] sm:$0xff]
        %v450 = vld [vmem:[%s317 + $0x60] sm:$0xff]
        %v451 = vld [vmem:[%s317 + $0x68] sm:$0xff]
        %v452 = vld [vmem:[%s317 + $0x70] sm:$0xff]
        %v453 = vld [vmem:[%s317 + $0x78] sm:$0xff]
        %v454 = vld [vmem:[%s326] sm:$0xff]
        %v455 = vld [vmem:[%s326 + $0x8] sm:$0xff]
        %v456 = vld [vmem:[%s326 + $0x10] sm:$0xff]
        %v457 = vld [vmem:[%s326 + $0x18] sm:$0xff]
        %v458 = vld [vmem:[%s326 + $0x20] sm:$0xff]
        %v459 = vld [vmem:[%s326 + $0x28] sm:$0xff]
        %v460 = vld [vmem:[%s326 + $0x30] sm:$0xff]
        %v461 = vld [vmem:[%s326 + $0x38] sm:$0xff]
        %v462 = vld [vmem:[%s326 + $0x40] sm:$0xff]
        %v463 = vld [vmem:[%s326 + $0x48] sm:$0xff]
        %v464 = vld [vmem:[%s326 + $0x50] sm:$0xff]
        %v465 = vld [vmem:[%s326 + $0x58] sm:$0xff]
        %v466 = vld [vmem:[%s326 + $0x60] sm:$0xff]
        %v467 = vld [vmem:[%s326 + $0x68] sm:$0xff]
        %v468 = vld [vmem:[%s326 + $0x70] sm:$0xff]
        %v469 = vld [vmem:[%s326 + $0x78] sm:$0xff]
        %470 = vmatprep.subr.mxu0 0.0
        %471 = vmatpush1.msra.mxu0 %v469
        %472 = vmatprep.subr.mxu0 0.0
        %473 = vmatpush1.msra.mxu0 %v468
        %474 = vmatprep.subr.mxu0 0.0
        %475 = vmatpush1.msra.mxu0 %v467
        %476 = vmatprep.subr.mxu0 0.0
        %477 = vmatpush1.msra.mxu0 %v466
        %478 = vmatprep.subr.mxu0 0.0
        %479 = vmatpush1.msra.mxu0 %v465
        %480 = vmatprep.subr.mxu0 0.0
        %481 = vmatpush1.msra.mxu0 %v464
        %482 = vmatprep.subr.mxu0 0.0
        %483 = vmatpush1.msra.mxu0 %v463
        %484 = vmatprep.subr.mxu0 0.0
        %485 = vmatpush1.msra.mxu0 %v462
        %486 = vmatprep.subr.mxu0 0.0
        %487 = vmatpush1.msra.mxu0 %v461
        %488 = vmatprep.subr.mxu0 0.0
        %489 = vmatpush1.msra.mxu0 %v460
        %490 = vmatprep.subr.mxu0 0.0
        %491 = vmatpush1.msra.mxu0 %v459
        %492 = vmatprep.subr.mxu0 0.0
        %493 = vmatpush1.msra.mxu0 %v458
        %494 = vmatprep.subr.mxu0 0.0
        %495 = vmatpush1.msra.mxu0 %v457
        %496 = vmatprep.subr.mxu0 0.0
        %497 = vmatpush1.msra.mxu0 %v456
        %498 = vmatprep.subr.mxu0 0.0
        %499 = vmatpush1.msra.mxu0 %v455
        %500 = vmatprep.subr.mxu0 0.0
        %501 = vmatpush1.msra.mxu0 %v454
        %502 = vmatprep.subr.mxu0 0.0
        %503 = vmatpush2.msra.mxu0 0.0
        %504 = vmatprep.subr.mxu0 0.0
        %505 = vmatpush2.msra.mxu0 0.0
        %506 = vmatprep.subr.mxu0 0.0
        %507 = vmatpush2.msra.mxu0 0.0
        %508 = vmatprep.subr.mxu0 0.0
        %509 = vmatpush2.msra.mxu0 0.0
        %510 = vmatprep.subr.mxu0 0.0
        %511 = vmatpush2.msra.mxu0 0.0
        %512 = vmatprep.subr.mxu0 0.0
        %513 = vmatpush2.msra.mxu0 0.0
        %514 = vmatprep.subr.mxu0 0.0
        %515 = vmatpush2.msra.mxu0 0.0
        %516 = vmatprep.subr.mxu0 0.0
        %517 = vmatpush2.msra.mxu0 0.0
        %518 = vmatprep.subr.mxu0 0.0
        %519 = vmatpush2.msra.mxu0 0.0
        %520 = vmatprep.subr.mxu0 0.0
        %521 = vmatpush2.msra.mxu0 0.0
        %522 = vmatprep.subr.mxu0 0.0
        %523 = vmatpush2.msra.mxu0 0.0
        %524 = vmatprep.subr.mxu0 0.0
        %525 = vmatpush2.msra.mxu0 0.0
        %526 = vmatprep.subr.mxu0 0.0
        %527 = vmatpush2.msra.mxu0 0.0
        %528 = vmatprep.subr.mxu0 0.0
        %529 = vmatpush2.msra.mxu0 0.0
        %530 = vmatprep.subr.mxu0 0.0
        %531 = vmatpush2.msra.mxu0 0.0
        %532 = vmatprep.subr.mxu0 0.0
        %533 = vmatpush2.msra.mxu0 0.0
        %534 = vmatprep.mubr.f32.mxu0 0.0
        %535 = vmatmul.mubr.f32.gmra.mxu0 %v438
        %v536 = vpop.f32.mrf.mxu0
        %v537 = vadd.f32 0.0, %v536
        %v538 = vpop.f32.mrf.mxu0
        %539 = vmatprep.mubr.f32.mxu0 0.0
        %540 = vmatmul.mubr.f32.gmra.mxu0 %v439
        %v541 = vpop.f32.mrf.mxu0
        %v542 = vadd.f32 0.0, %v541
        %v543 = vpop.f32.mrf.mxu0
        %544 = vmatprep.mubr.f32.mxu0 0.0
        %545 = vmatmul.mubr.f32.gmra.mxu0 %v440
        %v546 = vpop.f32.mrf.mxu0
        %v547 = vadd.f32 0.0, %v546
        %v548 = vpop.f32.mrf.mxu0
        %549 = vmatprep.mubr.f32.mxu0 0.0
        %550 = vmatmul.mubr.f32.gmra.mxu0 %v441
        %v551 = vpop.f32.mrf.mxu0
        %v552 = vadd.f32 0.0, %v551
        %v553 = vpop.f32.mrf.mxu0
        %554 = vmatprep.mubr.f32.mxu0 0.0
        %555 = vmatmul.mubr.f32.gmra.mxu0 %v442
        %v556 = vpop.f32.mrf.mxu0
        %v557 = vadd.f32 0.0, %v556
        %v558 = vpop.f32.mrf.mxu0
        %559 = vmatprep.mubr.f32.mxu0 0.0
        %560 = vmatmul.mubr.f32.gmra.mxu0 %v443
        %v561 = vpop.f32.mrf.mxu0
        %v562 = vadd.f32 0.0, %v561
        %v563 = vpop.f32.mrf.mxu0
        %564 = vmatprep.mubr.f32.mxu0 0.0
        %565 = vmatmul.mubr.f32.gmra.mxu0 %v444
        %v566 = vpop.f32.mrf.mxu0
        %v567 = vadd.f32 0.0, %v566
        %v568 = vpop.f32.mrf.mxu0
        %569 = vmatprep.mubr.f32.mxu0 0.0
        %570 = vmatmul.mubr.f32.gmra.mxu0 %v445
        %v571 = vpop.f32.mrf.mxu0
        %v572 = vadd.f32 0.0, %v571
        %v573 = vpop.f32.mrf.mxu0
        %574 = vmatprep.mubr.f32.mxu0 0.0
        %575 = vmatmul.mubr.f32.gmra.mxu0 %v446
        %v576 = vpop.f32.mrf.mxu0
        %v577 = vadd.f32 0.0, %v576
        %v578 = vpop.f32.mrf.mxu0
        %579 = vmatprep.mubr.f32.mxu0 0.0
        %580 = vmatmul.mubr.f32.gmra.mxu0 %v447
        %v581 = vpop.f32.mrf.mxu0
        %v582 = vadd.f32 0.0, %v581
        %v583 = vpop.f32.mrf.mxu0
        %584 = vmatprep.mubr.f32.mxu0 0.0
        %585 = vmatmul.mubr.f32.gmra.mxu0 %v448
        %v586 = vpop.f32.mrf.mxu0
        %v587 = vadd.f32 0.0, %v586
        %v588 = vpop.f32.mrf.mxu0
        %589 = vmatprep.mubr.f32.mxu0 0.0
        %590 = vmatmul.mubr.f32.gmra.mxu0 %v449
        %v591 = vpop.f32.mrf.mxu0
        %v592 = vadd.f32 0.0, %v591
        %v593 = vpop.f32.mrf.mxu0
        %594 = vmatprep.mubr.f32.mxu0 0.0
        %595 = vmatmul.mubr.f32.gmra.mxu0 %v450
        %v596 = vpop.f32.mrf.mxu0
        %v597 = vadd.f32 0.0, %v596
        %v598 = vpop.f32.mrf.mxu0
        %599 = vmatprep.mubr.f32.mxu0 0.0
        %600 = vmatmul.mubr.f32.gmra.mxu0 %v451
        %v601 = vpop.f32.mrf.mxu0
        %v602 = vadd.f32 0.0, %v601
        %v603 = vpop.f32.mrf.mxu0
        %604 = vmatprep.mubr.f32.mxu0 0.0
        %605 = vmatmul.mubr.f32.gmra.mxu0 %v452
        %v606 = vpop.f32.mrf.mxu0
        %v607 = vadd.f32 0.0, %v606
        %v608 = vpop.f32.mrf.mxu0
        %609 = vmatprep.mubr.f32.mxu0 0.0
        %610 = vmatmul.mubr.f32.gmra.mxu0 %v453
        %v611 = vpop.f32.mrf.mxu0
        %v612 = vadd.f32 0.0, %v611
        %v613 = vpop.f32.mrf.mxu0
        %614 = vdwg.mxu0
        %v615 = vadd.f32 %v422, %v537
        %v616 = vadd.f32 %v423, %v542
        %v617 = vadd.f32 %v424, %v547
        %v618 = vadd.f32 %v425, %v552
        %v619 = vadd.f32 %v426, %v557
        %v620 = vadd.f32 %v427, %v562
        %v621 = vadd.f32 %v428, %v567
        %v622 = vadd.f32 %v429, %v572
        %v623 = vadd.f32 %v430, %v577
        %v624 = vadd.f32 %v431, %v582
        %v625 = vadd.f32 %v432, %v587
        %v626 = vadd.f32 %v433, %v592
        %v627 = vadd.f32 %v434, %v597
        %v628 = vadd.f32 %v435, %v602
        %v629 = vadd.f32 %v436, %v607
        %v630 = vadd.f32 %v437, %v612
        %631 = vst [vmem:[#allocation2] sm:$0xff] %v615
        %632 = vst [vmem:[#allocation2 + $0x8] sm:$0xff] %v616
        %633 = vst [vmem:[#allocation2 + $0x10] sm:$0xff] %v617
        %634 = vst [vmem:[#allocation2 + $0x18] sm:$0xff] %v618
        %635 = vst [vmem:[#allocation2 + $0x20] sm:$0xff] %v619
        %636 = vst [vmem:[#allocation2 + $0x28] sm:$0xff] %v620
        %637 = vst [vmem:[#allocation2 + $0x30] sm:$0xff] %v621
        %638 = vst [vmem:[#allocation2 + $0x38] sm:$0xff] %v622
        %639 = vst [vmem:[#allocation2 + $0x40] sm:$0xff] %v623
        %640 = vst [vmem:[#allocation2 + $0x48] sm:$0xff] %v624
        %641 = vst [vmem:[#allocation2 + $0x50] sm:$0xff] %v625
        %642 = vst [vmem:[#allocation2 + $0x58] sm:$0xff] %v626
        %643 = vst [vmem:[#allocation2 + $0x60] sm:$0xff] %v627
        %644 = vst [vmem:[#allocation2 + $0x68] sm:$0xff] %v628
        %645 = vst [vmem:[#allocation2 + $0x70] sm:$0xff] %v629
        %646 = vst [vmem:[#allocation2 + $0x78] sm:$0xff] %v630
        %p647 = scmp.eq.s32.totalorder %s43, 1
        // Predicated region
        $region49: #{tpu_custom_call.1} parent=35 // pred_check
          %p648 = pneg %p647
        $region50: #{tpu_custom_call.1} parent=35 // pred_check_branch
          %650 = sbr.rel (%p648) target = $region52
        $region51: #{tpu_custom_call.1} parent=35 // pred_region
          %v651 = vld [vmem:[#allocation2] sm:$0xff]
          %v652 = vld [vmem:[#allocation2 + $0x8] sm:$0xff]
          %v653 = vld [vmem:[#allocation2 + $0x10] sm:$0xff]
          %v654 = vld [vmem:[#allocation2 + $0x18] sm:$0xff]
          %v655 = vld [vmem:[#allocation2 + $0x20] sm:$0xff]
          %v656 = vld [vmem:[#allocation2 + $0x28] sm:$0xff]
          %v657 = vld [vmem:[#allocation2 + $0x30] sm:$0xff]
          %v658 = vld [vmem:[#allocation2 + $0x38] sm:$0xff]
          %v659 = vld [vmem:[#allocation2 + $0x40] sm:$0xff]
          %v660 = vld [vmem:[#allocation2 + $0x48] sm:$0xff]
          %v661 = vld [vmem:[#allocation2 + $0x50] sm:$0xff]
          %v662 = vld [vmem:[#allocation2 + $0x58] sm:$0xff]
          %v663 = vld [vmem:[#allocation2 + $0x60] sm:$0xff]
          %v664 = vld [vmem:[#allocation2 + $0x68] sm:$0xff]
          %v665 = vld [vmem:[#allocation2 + $0x70] sm:$0xff]
          %v666 = vld [vmem:[#allocation2 + $0x78] sm:$0xff]
          %v667 = vld [vmem:[%s387] sm:$0xff]
          %v668 = vld [vmem:[%s387 + $0x8] sm:$0xff]
          %v669 = vld [vmem:[%s387 + $0x10] sm:$0xff]
          %v670 = vld [vmem:[%s387 + $0x18] sm:$0xff]
          %v671 = vld [vmem:[%s387 + $0x20] sm:$0xff]
          %v672 = vld [vmem:[%s387 + $0x28] sm:$0xff]
          %v673 = vld [vmem:[%s387 + $0x30] sm:$0xff]
          %v674 = vld [vmem:[%s387 + $0x38] sm:$0xff]
          %v675 = vld [vmem:[%s387 + $0x40] sm:$0xff]
          %v676 = vld [vmem:[%s387 + $0x48] sm:$0xff]
          %v677 = vld [vmem:[%s387 + $0x50] sm:$0xff]
          %v678 = vld [vmem:[%s387 + $0x58] sm:$0xff]
          %v679 = vld [vmem:[%s387 + $0x60] sm:$0xff]
          %v680 = vld [vmem:[%s387 + $0x68] sm:$0xff]
          %v681 = vld [vmem:[%s387 + $0x70] sm:$0xff]
          %v682 = vld [vmem:[%s387 + $0x78] sm:$0xff]
          %684 = vset.pattern.permute.xlu0 0
          %685 = vperm.xlu0 %684, %v667
          %v686 = vpop.permute.xlu0 %685
          %689 = vset.pattern.permute.xlu0 0
          %690 = vperm.xlu0 %689, %v668
          %v691 = vpop.permute.xlu0 %690
          %694 = vset.pattern.permute.xlu0 0
          %695 = vperm.xlu0 %694, %v669
          %v696 = vpop.permute.xlu0 %695
          %699 = vset.pattern.permute.xlu0 0
          %700 = vperm.xlu0 %699, %v670
          %v701 = vpop.permute.xlu0 %700
          %704 = vset.pattern.permute.xlu0 0
          %705 = vperm.xlu0 %704, %v671
          %v706 = vpop.permute.xlu0 %705
          %709 = vset.pattern.permute.xlu0 0
          %710 = vperm.xlu0 %709, %v672
          %v711 = vpop.permute.xlu0 %710
          %714 = vset.pattern.permute.xlu0 0
          %715 = vperm.xlu0 %714, %v673
          %v716 = vpop.permute.xlu0 %715
          %719 = vset.pattern.permute.xlu0 0
          %720 = vperm.xlu0 %719, %v674
          %v721 = vpop.permute.xlu0 %720
          %724 = vset.pattern.permute.xlu0 0
          %725 = vperm.xlu0 %724, %v675
          %v726 = vpop.permute.xlu0 %725
          %729 = vset.pattern.permute.xlu0 0
          %730 = vperm.xlu0 %729, %v676
          %v731 = vpop.permute.xlu0 %730
          %734 = vset.pattern.permute.xlu0 0
          %735 = vperm.xlu0 %734, %v677
          %v736 = vpop.permute.xlu0 %735
          %739 = vset.pattern.permute.xlu0 0
          %740 = vperm.xlu0 %739, %v678
          %v741 = vpop.permute.xlu0 %740
          %744 = vset.pattern.permute.xlu0 0
          %745 = vperm.xlu0 %744, %v679
          %v746 = vpop.permute.xlu0 %745
          %749 = vset.pattern.permute.xlu0 0
          %750 = vperm.xlu0 %749, %v680
          %v751 = vpop.permute.xlu0 %750
          %754 = vset.pattern.permute.xlu0 0
          %755 = vperm.xlu0 %754, %v681
          %v756 = vpop.permute.xlu0 %755
          %759 = vset.pattern.permute.xlu0 0
          %760 = vperm.xlu0 %759, %v682
          %v761 = vpop.permute.xlu0 %760
          %v763 = vmul.f32 %v651, %v686
          %v764 = vmul.f32 %v652, %v691
          %v765 = vmul.f32 %v653, %v696
          %v766 = vmul.f32 %v654, %v701
          %v767 = vmul.f32 %v655, %v706
          %v768 = vmul.f32 %v656, %v711
          %v769 = vmul.f32 %v657, %v716
          %v770 = vmul.f32 %v658, %v721
          %v771 = vmul.f32 %v659, %v726
          %v772 = vmul.f32 %v660, %v731
          %v773 = vmul.f32 %v661, %v736
          %v774 = vmul.f32 %v662, %v741
          %v775 = vmul.f32 %v663, %v746
          %v776 = vmul.f32 %v664, %v751
          %v777 = vmul.f32 %v665, %v756
          %v778 = vmul.f32 %v666, %v761
          %v779 = vld [vmem:[%s397] sm:$0x1]
          %v781 = vlaneseq
          %v782 = vshrl.u32 %v781, 7
          %v783 = vsub.s32 0, %v782
          %v784 = vrot.slane %v779, %v783
          %v786 = vmul.f32 %v763, %v784
          %v787 = vmul.f32 %v764, %v784
          %v788 = vmul.f32 %v765, %v784
          %v789 = vmul.f32 %v766, %v784
          %v790 = vmul.f32 %v767, %v784
          %v791 = vmul.f32 %v768, %v784
          %v792 = vmul.f32 %v769, %v784
          %v793 = vmul.f32 %v770, %v784
          %v794 = vmul.f32 %v771, %v784
          %v795 = vmul.f32 %v772, %v784
          %v796 = vmul.f32 %v773, %v784
          %v797 = vmul.f32 %v774, %v784
          %v798 = vmul.f32 %v775, %v784
          %v799 = vmul.f32 %v776, %v784
          %v800 = vmul.f32 %v777, %v784
          %v801 = vmul.f32 %v778, %v784
          %802 = vst [vmem:[%s373] sm:$0xff] %v786
          %803 = vst [vmem:[%s373 + $0x8] sm:$0xff] %v787
          %804 = vst [vmem:[%s373 + $0x10] sm:$0xff] %v788
          %805 = vst [vmem:[%s373 + $0x18] sm:$0xff] %v789
          %806 = vst [vmem:[%s373 + $0x20] sm:$0xff] %v790
          %807 = vst [vmem:[%s373 + $0x28] sm:$0xff] %v791
          %808 = vst [vmem:[%s373 + $0x30] sm:$0xff] %v792
          %809 = vst [vmem:[%s373 + $0x38] sm:$0xff] %v793
          %810 = vst [vmem:[%s373 + $0x40] sm:$0xff] %v794
          %811 = vst [vmem:[%s373 + $0x48] sm:$0xff] %v795
          %812 = vst [vmem:[%s373 + $0x50] sm:$0xff] %v796
          %813 = vst [vmem:[%s373 + $0x58] sm:$0xff] %v797
          %814 = vst [vmem:[%s373 + $0x60] sm:$0xff] %v798
          %815 = vst [vmem:[%s373 + $0x68] sm:$0xff] %v799
          %816 = vst [vmem:[%s373 + $0x70] sm:$0xff] %v800
          %817 = vst [vmem:[%s373 + $0x78] sm:$0xff] %v801
        $region52: #{tpu_custom_call.1} parent=35 // pred_fallthru
          _
        %s818 = sand.u32 %s195, 1
        %s819 = scalar_lea.sflag [#allocation8], %s818
        %s820 = sand.u32 %s195, 1
        %s821 = smul.addr %s820, 128
        %s822 = scalar_lea.vmem [#allocation11], %s821
        // Predicated region
        $region53: #{tpu_custom_call.1} parent=35 // pred_check
          %p823 = pneg %p205
        $region54: #{tpu_custom_call.1} parent=35 // pred_check_branch
          %825 = sbr.rel (%p823) target = $region56
        $region55: #{tpu_custom_call.1} parent=35 // pred_region
          %s826 = sld [smem:[#allocation4 + %s42]]
          %s827 = sld [smem:[#allocation5 + %s42]]
          %s828 = smul.u32 16, %s826
          %s830 = ssub.s32 2048, 2048
          %831 = vsyncadd %s819, %s830
          %s832 = smul.addr %s828, 2
          %s833 = sadd.s32 %s827, %s832
          %s834 = smul.addr %s41, 64
          %s835 = sadd.s32 %s833, %s834
          %s836 = smul.addr %s835, 128
          %s837 = scalar_lea.hbm %s6, %s836
          %s838 = sshll.u32 %s822, 4
          %s839 = int_to_ptr.vmem [resolvable:$true] %s838
          %844 = dma.vmem_to_hbm [thread:$0]  %s839, 2048, %s837, %s819, 128, 256, 8
        $region56: #{tpu_custom_call.1} parent=35 // pred_fallthru
          _
      $region36: #{tpu_custom_call.1} parent=5 // pred_fallthru
        _
      %p845 = scmp.le.s32.totalorder 2, %s31
      // Predicated region
      $region57: #{tpu_custom_call.1} parent=5 // pred_check
        %p846 = pneg %p845
      $region58: #{tpu_custom_call.1} parent=5 // pred_check_branch
        %848 = sbr.rel (%p846) target = $region60
      $region59: #{tpu_custom_call.1} parent=5 // pred_region
        %s849 = ssub.s32 %s31, 2
        // Predicated region
        $region61: #{tpu_custom_call.1} parent=59 // pred_check
          %p850 = pneg %p211
        $region62: #{tpu_custom_call.1} parent=59 // pred_check_branch
          %852 = sbr.rel (%p850) target = $region64
        $region63: #{tpu_custom_call.1} parent=59 // pred_region
          %s853 = sand.u32 %s196, 1
          %s854 = scalar_lea.sflag [#allocation8], %s853
          %s855 = sand.u32 %s196, 1
          %s856 = smul.addr %s855, 128
          %s857 = scalar_lea.vmem [#allocation11], %s856
          %858 = dma.done %s854, 2048
        $region64: #{tpu_custom_call.1} parent=59 // pred_fallthru
          _
      $region60: #{tpu_custom_call.1} parent=5 // pred_fallthru
        _
    $region6: #{tpu_custom_call.1} parent=1 // loop_footer
      %s35 = sadd.s32 1, %s31
    $region7: #{tpu_custom_call.1} parent=1 // loop_footer_branch
      %30 = sbr.rel target = $region3
    $region8: #{tpu_custom_call.1} parent=1 // loop_exit
      _
    %859 = vsyncpa [#allocation7], 1
    %s860 = scalar_lea.sflag [#allocation7], 1
    %861 = vsyncpa %s860, 1
    %862 = vsyncpa [#allocation10], 1
    %s863 = scalar_lea.sflag [#allocation10], 1
    %864 = vsyncpa %s863, 1
    %865 = vsyncpa [#allocation8], 1
    %s866 = scalar_lea.sflag [#allocation8], 1
    %867 = vsyncpa %s866, 1

</llo_original>
